<compile_context>
chip_gen: v7x
topology: tpu7x:2x2x1
jax: 0.10.0
libtpu: 0.0.40
codegen_flags: <defaults>
</compile_context>

<pallas_src>
import functools
import math

import jax
import jax.numpy as jnp
from jax.experimental import pallas as pl
from jax.experimental.pallas import tpu as pltpu

# Module defaults (match SoftDiceLoss(smooth=1.0, batch_dice=True, with_logits=True)).
SMOOTH = 1.0
WITH_LOGITS = True
BATCH_DICE = True
# TODO(synk): batch_dice=False path (per-sample dice, then mean) not implemented;
#             the module default (batch_dice=True) is what this kernel computes.

_LANES = 128
_TILE_ROWS = 2048  # 2048 x 128 f32 tile = 1 MiB per input per pipeline buffer.


def _round_up(a: int, b: int) -> int:
    return ((a + b - 1) // b) * b


def _soft_dice_kernel(x_ref, t_ref, o_ref, acc_ref, *, smooth, with_logits,
                      n_valid, tile_elems, need_mask):
    i = pl.program_id(0)

    # Promote to f32 in-kernel (inputs arrive in their native dtype).
    x = x_ref[...].astype(jnp.float32)
    t = t_ref[...].astype(jnp.float32)
    p = jax.nn.sigmoid(x) if with_logits else x

    if need_mask:
        # Only the zero-padded tail needs masking; targets are zero-padded so
        # only p (sigmoid(0)=0.5 on the pad) has to be zeroed out.
        row = jax.lax.broadcasted_iota(jnp.int32, p.shape, 0)
        lane = jax.lax.broadcasted_iota(jnp.int32, p.shape, 1)
        flat = i * tile_elems + row * p.shape[1] + lane
        p = jnp.where(flat < n_valid, p, 0.0)

    # Hierarchical reduction: sublane axis first, lane axis last.
    s_pt = jnp.sum(jnp.sum(p * t, axis=0))
    s_p = jnp.sum(jnp.sum(p, axis=0))
    s_t = jnp.sum(jnp.sum(t, axis=0))

    @pl.when(i == 0)
    def _init():
        acc_ref[0] = jnp.float32(0.0)
        acc_ref[1] = jnp.float32(0.0)
        acc_ref[2] = jnp.float32(0.0)

    acc_ref[0] += s_pt
    acc_ref[1] += s_p
    acc_ref[2] += s_t

    @pl.when(i == pl.num_programs(0) - 1)
    def _finalize():
        dice = (2.0 * acc_ref[0] + smooth) / (acc_ref[1] + acc_ref[2] + smooth)
        o_ref[0, 0] = 1.0 - dice


def soft_dice_loss_pallas(inputs: jax.Array, targets: jax.Array, *,
                          smooth: float = SMOOTH,
                          with_logits: bool = WITH_LOGITS,
                          tile_rows: int = _TILE_ROWS) -> jax.Array:
    """Soft Dice loss (batch_dice=True). Returns a scalar. Any input shape/dtype."""
    assert inputs.shape == targets.shape
    n = math.prod(inputs.shape)

    rows = -(-n // _LANES)
    tile_rows = min(tile_rows, _round_up(rows, 8))
    rows_pad = _round_up(rows, tile_rows)
    n_pad = rows_pad * _LANES
    grid = rows_pad // tile_rows

    # Lane-dense 2-D layout; NO dtype cast here (done inside the kernel).
    x = inputs.reshape(-1)
    t = targets.reshape(-1)
    if n_pad != n:
        x = jnp.pad(x, (0, n_pad - n))
        t = jnp.pad(t, (0, n_pad - n))
    x = x.reshape(rows_pad, _LANES)
    t = t.reshape(rows_pad, _LANES)

    kernel = functools.partial(
        _soft_dice_kernel,
        smooth=float(smooth),
        with_logits=with_logits,
        n_valid=n,
        tile_elems=tile_rows * _LANES,
        need_mask=(n_pad != n) and with_logits,
    )

    cost = pl.CostEstimate(
        flops=6 * n_pad,
        transcendentals=n_pad if with_logits else 0,
        bytes_accessed=int(x.size) * x.dtype.itemsize
        + int(t.size) * t.dtype.itemsize + 4,
    )

    out = pl.pallas_call(
        kernel,
        out_shape=jax.ShapeDtypeStruct((1, 1), jnp.float32),
        grid=(grid,),
        in_specs=[
            pl.BlockSpec((tile_rows, _LANES), lambda i: (i, 0)),
            pl.BlockSpec((tile_rows, _LANES), lambda i: (i, 0)),
        ],
        out_specs=pl.BlockSpec(memory_space=pltpu.MemorySpace.SMEM),
        scratch_shapes=[pltpu.SMEM((3,), jnp.float32)],
        compiler_params=pltpu.CompilerParams(
            # SMEM accumulator is resident across the grid -> serial axis.
            # TODO(synk): for v7x megacore, emit per-tile partial sums to a
            # blocked output and reduce outside so this axis can be "parallel".
            dimension_semantics=("arbitrary",),
            vmem_limit_bytes=32 * 1024 * 1024,
        ),
        cost_estimate=cost,
    )(x, t)
    return out[0, 0]


def soft_dice_loss_ref(inputs: jax.Array, targets: jax.Array, *,
                       smooth: float = SMOOTH,
                       with_logits: bool = WITH_LOGITS) -> jax.Array:
    """Pure-JAX reference mirroring the PyTorch SoftDiceLoss (batch_dice=True)."""
    p = inputs.astype(jnp.float32)
    if with_logits:
        p = jax.nn.sigmoid(p)
    t = targets.astype(jnp.float32)
    p = p.reshape(-1)
    t = t.reshape(-1)
    inter = jnp.sum(p * t)
    dice = (2.0 * inter + smooth) / (jnp.sum(p) + jnp.sum(t) + smooth)
    return 1.0 - dice


if __name__ == "__main__":
    key = jax.random.PRNGKey(0)
    k1, k2 = jax.random.split(key)
    B, C, H, W = 2, 4, 16, 16
    logits = jax.random.normal(k1, (B, C, H, W), dtype=jnp.float32)
    targets = (jax.random.uniform(k2, (B, C, H, W)) > 0.5).astype(jnp.float32)

    loss = jax.block_until_ready(soft_dice_loss_pallas(logits, targets))
    ref = jax.block_until_ready(soft_dice_loss_ref(logits, targets))
    assert jnp.isfinite(loss), "non-finite loss"
    assert jnp.allclose(loss, ref, rtol=1e-5, atol=1e-6), (loss, ref)
    print("KERNEL_OK")
</pallas_src>

<mosaic_0001>
module attributes {stable_mosaic.version = 11 : i64} {
  func.func @_soft_dice_kernel(%arg0: i32, %arg1: memref<16x128xf32, #tpu.memory_space<vmem>>, %arg2: memref<16x128xf32, #tpu.memory_space<vmem>>, %arg3: memref<1x1xf32, #tpu.memory_space<smem>>, %arg4: memref<3xf32, #tpu.memory_space<smem>>) attributes {dimension_semantics = [#tpu.dimension_semantics<arbitrary>], iteration_bounds = array<i64: 1>, scalar_prefetch = 0 : i64, scratch_operands = 1 : i64, tpu.core_type = #tpu.core_type<tc>, window_params = [{transform_indices = @transform_0, window_bounds = array<i64: 16, 128>}, {transform_indices = @transform_1, window_bounds = array<i64: 16, 128>}, {transform_indices = @transform_2, window_bounds = array<i64: 1, 1>}]} {
    %c0 = arith.constant 0 : index
    %c0_0 = arith.constant 0 : index
    %0 = vector.load %arg1[%c0, %c0_0] : memref<16x128xf32, #tpu.memory_space<vmem>>, vector<16x128xf32>
    %c0_1 = arith.constant 0 : index
    %c0_2 = arith.constant 0 : index
    %1 = vector.load %arg2[%c0_1, %c0_2] : memref<16x128xf32, #tpu.memory_space<vmem>>, vector<16x128xf32>
    %2 = arith.negf %0 : vector<16x128xf32>
    %3 = math.exp %2 : vector<16x128xf32>
    %cst = arith.constant 1.000000e+00 : f32
    %4 = vector.broadcast %cst : f32 to vector<16x128xf32>
    %5 = arith.addf %4, %3 : vector<16x128xf32>
    %6 = arith.divf %4, %5 : vector<16x128xf32>
    %7 = arith.mulf %6, %1 : vector<16x128xf32>
    %cst_3 = arith.constant dense<0.000000e+00> : vector<128xf32>
    %8 = vector.multi_reduction <add>, %7, %cst_3 [0] : vector<16x128xf32> to vector<128xf32>
    %9 = vector.shape_cast %8 : vector<128xf32> to vector<1x128xf32>
    %cst_4 = arith.constant dense<0.000000e+00> : vector<1xf32>
    %10 = vector.multi_reduction <add>, %9, %cst_4 [1] : vector<1x128xf32> to vector<1xf32>
    %11 = vector.shape_cast %10 : vector<1xf32> to vector<1x1xf32>
    %12 = vector.extract %11[0, 0] : f32 from vector<1x1xf32>
    %cst_5 = arith.constant dense<0.000000e+00> : vector<128xf32>
    %13 = vector.multi_reduction <add>, %6, %cst_5 [0] : vector<16x128xf32> to vector<128xf32>
    %14 = vector.shape_cast %13 : vector<128xf32> to vector<1x128xf32>
    %cst_6 = arith.constant dense<0.000000e+00> : vector<1xf32>
    %15 = vector.multi_reduction <add>, %14, %cst_6 [1] : vector<1x128xf32> to vector<1xf32>
    %16 = vector.shape_cast %15 : vector<1xf32> to vector<1x1xf32>
    %17 = vector.extract %16[0, 0] : f32 from vector<1x1xf32>
    %cst_7 = arith.constant dense<0.000000e+00> : vector<128xf32>
    %18 = vector.multi_reduction <add>, %1, %cst_7 [0] : vector<16x128xf32> to vector<128xf32>
    %19 = vector.shape_cast %18 : vector<128xf32> to vector<1x128xf32>
    %cst_8 = arith.constant dense<0.000000e+00> : vector<1xf32>
    %20 = vector.multi_reduction <add>, %19, %cst_8 [1] : vector<1x128xf32> to vector<1xf32>
    %21 = vector.shape_cast %20 : vector<1xf32> to vector<1x1xf32>
    %22 = vector.extract %21[0, 0] : f32 from vector<1x1xf32>
    %c0_i32 = arith.constant 0 : i32
    %23 = arith.cmpi eq, %arg0, %c0_i32 : i32
    %24 = arith.extui %23 : i1 to i32
    %c0_i32_9 = arith.constant 0 : i32
    %25 = arith.cmpi ne, %24, %c0_i32_9 : i32
    scf.if %25 {
      %cst_16 = arith.constant 0.000000e+00 : f32
      %c0_17 = arith.constant 0 : index
      %38 = memref.load %arg4[%c0_17] : memref<3xf32, #tpu.memory_space<smem>>
      memref.store %cst_16, %arg4[%c0_17] : memref<3xf32, #tpu.memory_space<smem>>
      %cst_18 = arith.constant 0.000000e+00 : f32
      %c1_19 = arith.constant 1 : index
      %39 = memref.load %arg4[%c1_19] : memref<3xf32, #tpu.memory_space<smem>>
      memref.store %cst_18, %arg4[%c1_19] : memref<3xf32, #tpu.memory_space<smem>>
      %cst_20 = arith.constant 0.000000e+00 : f32
      %c2_21 = arith.constant 2 : index
      %40 = memref.load %arg4[%c2_21] : memref<3xf32, #tpu.memory_space<smem>>
      memref.store %cst_20, %arg4[%c2_21] : memref<3xf32, #tpu.memory_space<smem>>
    } else {
    }
    %c0_10 = arith.constant 0 : index
    %26 = memref.load %arg4[%c0_10] : memref<3xf32, #tpu.memory_space<smem>>
    %27 = arith.addf %26, %12 : f32
    %c0_11 = arith.constant 0 : index
    %28 = memref.load %arg4[%c0_11] : memref<3xf32, #tpu.memory_space<smem>>
    memref.store %27, %arg4[%c0_11] : memref<3xf32, #tpu.memory_space<smem>>
    %c1 = arith.constant 1 : index
    %29 = memref.load %arg4[%c1] : memref<3xf32, #tpu.memory_space<smem>>
    %30 = arith.addf %29, %17 : f32
    %c1_12 = arith.constant 1 : index
    %31 = memref.load %arg4[%c1_12] : memref<3xf32, #tpu.memory_space<smem>>
    memref.store %30, %arg4[%c1_12] : memref<3xf32, #tpu.memory_space<smem>>
    %c2 = arith.constant 2 : index
    %32 = memref.load %arg4[%c2] : memref<3xf32, #tpu.memory_space<smem>>
    %33 = arith.addf %32, %22 : f32
    %c2_13 = arith.constant 2 : index
    %34 = memref.load %arg4[%c2_13] : memref<3xf32, #tpu.memory_space<smem>>
    memref.store %33, %arg4[%c2_13] : memref<3xf32, #tpu.memory_space<smem>>
    %c0_i32_14 = arith.constant 0 : i32
    %35 = arith.cmpi eq, %arg0, %c0_i32_14 : i32
    %36 = arith.extui %35 : i1 to i32
    %c0_i32_15 = arith.constant 0 : i32
    %37 = arith.cmpi ne, %36, %c0_i32_15 : i32
    scf.if %37 {
      %c0_16 = arith.constant 0 : index
      %38 = memref.load %arg4[%c0_16] : memref<3xf32, #tpu.memory_space<smem>>
      %cst_17 = arith.constant 2.000000e+00 : f32
      %39 = arith.mulf %cst_17, %38 : f32
      %cst_18 = arith.constant 1.000000e+00 : f32
      %40 = arith.addf %39, %cst_18 : f32
      %c1_19 = arith.constant 1 : index
      %41 = memref.load %arg4[%c1_19] : memref<3xf32, #tpu.memory_space<smem>>
      %c2_20 = arith.constant 2 : index
      %42 = memref.load %arg4[%c2_20] : memref<3xf32, #tpu.memory_space<smem>>
      %43 = arith.addf %41, %42 : f32
      %cst_21 = arith.constant 1.000000e+00 : f32
      %44 = arith.addf %43, %cst_21 : f32
      %45 = arith.divf %40, %44 : f32
      %cst_22 = arith.constant 1.000000e+00 : f32
      %46 = arith.subf %cst_22, %45 : f32
      %c0_23 = arith.constant 0 : index
      %c0_24 = arith.constant 0 : index
      %47 = memref.load %arg3[%c0_23, %c0_24] : memref<1x1xf32, #tpu.memory_space<smem>>
      memref.store %46, %arg3[%c0_23, %c0_24] : memref<1x1xf32, #tpu.memory_space<smem>>
    } else {
    }
    return
  }
  func.func @transform_0(%arg0: i32) -> (i32, i32) {
    %c0_i32 = arith.constant 0 : i32
    %c0_i32_0 = arith.constant 0 : i32
    return %arg0, %c0_i32 : i32, i32
  }
  func.func @transform_1(%arg0: i32) -> (i32, i32) {
    %c0_i32 = arith.constant 0 : i32
    %c0_i32_0 = arith.constant 0 : i32
    return %arg0, %c0_i32 : i32, i32
  }
  func.func @transform_2(%arg0: i32) -> (i32, i32) {
    %c0_i32 = arith.constant 0 : i32
    %c0_i32_0 = arith.constant 0 : i32
    %c0_i32_1 = arith.constant 0 : i32
    return %c0_i32, %c0_i32_0 : i32, i32
  }
}

</mosaic_0001>

<llo_original>
// kernel: tpu_custom_call.1
$region0: #{tpu_custom_call.1}
  #allocation0 [shape = 'u32[]', space=smem, size = 0x4, offset = 0x4, fixed_abs, tag = 'smem constant byte address 0x4 - core index']
  #allocation1 [shape = 'u32[144,128]{1,0:T(1,128)}', space=vmem, size = 0x12000, scoped, tag = 'internal scratch']
  #allocation2 [shape = 'f32[3]{0:T(128)}', space=smem, size = 0x200, scoped, tag = 'scratch operand']
  %s0 = inlined_call_operand.hbm [shape: f32[16,128], index: 0, kind: input, shape index: {}]
  %s1 = inlined_call_operand.hbm [shape: f32[16,128], index: 1, kind: input, shape index: {}]
  %s2 = inlined_call_operand.hbm [shape: f32[1,1], index: 2, kind: output, shape index: {}]
  %s3 = sld [smem:[#allocation0]]
  $region34: #{tpu_custom_call.1} parent=0
    _
  %s5 = ssub.s32 1, %s3
  %s6 = scalar_select 0, %s5, %s3
  $region1: #{tpu_custom_call.1} parent=0
    #allocation3 [shape = 'u8[8192]{0}', space=vmem, size = 0x2000, scoped, tag = 'input window, operand 0, single buffered']
    #allocation4 [shape = 's32[1]{0}', space=sflag, size = 0x4, scoped, tag = 'scoped memory for tpu_custom_call.1']
    #allocation5 [shape = 's32[1]{0}', space=sflag, size = 0x4, scoped, tag = 'scoped memory for tpu_custom_call.1']
    #allocation6 [shape = 'u8[8192]{0}', space=vmem, size = 0x2000, scoped, tag = 'input window, operand 1, single buffered']
    #allocation7 [shape = 's32[1]{0}', space=sflag, size = 0x4, scoped, tag = 'scoped memory for tpu_custom_call.1']
    #allocation8 [shape = 'u8[512]{0}', space=smem, size = 0x200, scoped, tag = 'output window, operand 0, single buffered']
    %7 = vsyncpa [#allocation4], 0
    %8 = vsyncpa [#allocation7], 0
    %9 = vsyncpa [#allocation5], 0
    // Predicated region
    $region2: #{tpu_custom_call.1} parent=1 // pred_check
      _
    $region3: #{tpu_custom_call.1} parent=1 // pred_check_branch
      %11 = sbr.rel (0) target = $region5
    $region4: #{tpu_custom_call.1} parent=1 // pred_region
      %s13 = ssub.s32 256, 256
      %14 = vsyncadd [#allocation4], %s13
      %s15 = sshll.u32 [#allocation3], 4
      %s16 = int_to_ptr.vmem [resolvable:$true] %s15
      %21 = dma.hbm_to_vmem [thread:$0]  %s0, 256, %s16, [#allocation4], 128, 128, 8
    $region5: #{tpu_custom_call.1} parent=1 // pred_fallthru
      _
    // Predicated region
    $region6: #{tpu_custom_call.1} parent=1 // pred_check
      _
    $region7: #{tpu_custom_call.1} parent=1 // pred_check_branch
      %23 = sbr.rel (0) target = $region9
    $region8: #{tpu_custom_call.1} parent=1 // pred_region
      %s25 = ssub.s32 256, 256
      %26 = vsyncadd [#allocation7], %s25
      %s27 = sshll.u32 [#allocation6], 4
      %s28 = int_to_ptr.vmem [resolvable:$true] %s27
      %33 = dma.hbm_to_vmem [thread:$0]  %s1, 256, %s28, [#allocation7], 128, 128, 8
    $region9: #{tpu_custom_call.1} parent=1 // pred_fallthru
      _
    // Predicated region
    $region10: #{tpu_custom_call.1} parent=1 // pred_check
      _
    $region11: #{tpu_custom_call.1} parent=1 // pred_check_branch
      %35 = sbr.rel (0) target = $region13
    $region12: #{tpu_custom_call.1} parent=1 // pred_region
      %36 = dma.done [#allocation4], 256
    $region13: #{tpu_custom_call.1} parent=1 // pred_fallthru
      _
    // Predicated region
    $region14: #{tpu_custom_call.1} parent=1 // pred_check
      _
    $region15: #{tpu_custom_call.1} parent=1 // pred_check_branch
      %38 = sbr.rel (0) target = $region17
    $region16: #{tpu_custom_call.1} parent=1 // pred_region
      %39 = dma.done [#allocation7], 256
    $region17: #{tpu_custom_call.1} parent=1 // pred_fallthru
      _
    %v40 = vld [vmem:[#allocation3] sm:$0xff]
    %v41 = vld [vmem:[#allocation3 + $0x8] sm:$0xff]
    %v42 = vld [vmem:[#allocation6] sm:$0xff]
    %v43 = vld [vmem:[#allocation6 + $0x8] sm:$0xff]
    %v44 = vxor.u32 %v40, 2147483648
    %v45 = vxor.u32 %v41, 2147483648
    %v46 = vmul.f32 %v44, 1.442695
    %v47 = vpow.pop %v46
    %v48 = vmul.f32 %v45, 1.442695
    %v49 = vpow.pop %v48
    %v50 = vadd.f32 %v47, 1.0
    %v51 = vadd.f32 %v49, 1.0
    %v52 = vrcp.pop %v50
    %v53 = vmul.f32 1.0, %v52
    %v54 = vrcp.pop %v51
    %v55 = vmul.f32 1.0, %v54
    %v56 = vmul.f32 %v53, %v42
    %v57 = vmul.f32 %v55, %v43
    %v58 = vadd.f32 %v56, %v57
    %v59 = vrot.slane %v58, 4
    %v60 = vadd.f32 %v58, %v59
    %v61 = vrot.slane %v60, 2
    %v62 = vadd.f32 %v60, %v61
    %v63 = vrot.slane %v62, 1
    %v64 = vadd.f32 %v62, %v63
    %65 = vadd.xlane.f32.xlu0 %v64
    %v66 = vpop.xlane.xlu0 %65
    %s67 = vtos %v66
    %v68 = vadd.f32 %v53, %v55
    %v69 = vrot.slane %v68, 4
    %v70 = vadd.f32 %v68, %v69
    %v71 = vrot.slane %v70, 2
    %v72 = vadd.f32 %v70, %v71
    %v73 = vrot.slane %v72, 1
    %v74 = vadd.f32 %v72, %v73
    %75 = vadd.xlane.f32.xlu0 %v74
    %v76 = vpop.xlane.xlu0 %75
    %s77 = vtos %v76
    %v78 = vadd.f32 %v42, %v43
    %v79 = vrot.slane %v78, 4
    %v80 = vadd.f32 %v78, %v79
    %v81 = vrot.slane %v80, 2
    %v82 = vadd.f32 %v80, %v81
    %v83 = vrot.slane %v82, 1
    %v84 = vadd.f32 %v82, %v83
    %85 = vadd.xlane.f32.xlu0 %v84
    %v86 = vpop.xlane.xlu0 %85
    %s87 = vtos %v86
    %p88 = scmp.eq.s32.totalorder 0, 0
    // Predicated region
    $region18: #{tpu_custom_call.1} parent=1 // pred_check
      %p89 = pneg %p88
    $region19: #{tpu_custom_call.1} parent=1 // pred_check_branch
      %91 = sbr.rel (%p89) target = $region21
    $region20: #{tpu_custom_call.1} parent=1 // pred_region
      %s92 = scalar_lea.smem [#allocation2], 0
      %93 = sst [smem:[%s92]] 0.0
      %s94 = scalar_lea.smem [#allocation2], 1
      %95 = sst [smem:[%s94]] 0.0
      %s96 = scalar_lea.smem [#allocation2], 2
      %97 = sst [smem:[%s96]] 0.0
    $region21: #{tpu_custom_call.1} parent=1 // pred_fallthru
      _
    %s98 = sld [smem:[#allocation2]]
    %s99 = sadd.f32 %s98, %s67
    %s100 = scalar_lea.smem [#allocation2], 0
    %101 = sst [smem:[%s100]] %s99
    %s102 = sld [smem:[#allocation2 + $0x1]]
    %s103 = sadd.f32 %s102, %s77
    %s104 = scalar_lea.smem [#allocation2], 1
    %105 = sst [smem:[%s104]] %s103
    %s106 = sld [smem:[#allocation2 + $0x2]]
    %s107 = sadd.f32 %s106, %s87
    %s108 = scalar_lea.smem [#allocation2], 2
    %109 = sst [smem:[%s108]] %s107
    // Predicated region
    $region22: #{tpu_custom_call.1} parent=1 // pred_check
      %p110 = pneg %p88
    $region23: #{tpu_custom_call.1} parent=1 // pred_check_branch
      %112 = sbr.rel (%p110) target = $region25
    $region24: #{tpu_custom_call.1} parent=1 // pred_region
      %s113 = sld [smem:[#allocation2]]
      %s114 = smul.f32 %s113, 2.0
      %s115 = sadd.f32 %s114, 1.0
      %s116 = sld [smem:[#allocation2 + $0x1]]
      %s117 = sld [smem:[#allocation2 + $0x2]]
      %s118 = sadd.f32 %s116, %s117
      %s119 = sadd.f32 %s118, 1.0
      %v120 = vstv %s119
      %v121 = vrcp.pop %v120
      %s122 = vtos %v121
      %s123 = smul.f32 %s115, %s122
      %s124 = ssub.f32 1.0, %s123
      %s125 = scalar_lea.smem [#allocation8], 0
      %126 = sst [smem:[%s125]] %s124
    $region25: #{tpu_custom_call.1} parent=1 // pred_fallthru
      _
    // Predicated region
    $region26: #{tpu_custom_call.1} parent=1 // pred_check
      _
    $region27: #{tpu_custom_call.1} parent=1 // pred_check_branch
      %128 = sbr.rel (0) target = $region29
    $region28: #{tpu_custom_call.1} parent=1 // pred_region
      %s130 = ssub.s32 16, 16
      %131 = vsyncadd [#allocation5], %s130
      %134 = dma.smem_to_hbm [#allocation8], 16, %s2, [#allocation5]
    $region29: #{tpu_custom_call.1} parent=1 // pred_fallthru
      _
    // Predicated region
    $region30: #{tpu_custom_call.1} parent=1 // pred_check
      _
    $region31: #{tpu_custom_call.1} parent=1 // pred_check_branch
      %136 = sbr.rel (0) target = $region33
    $region32: #{tpu_custom_call.1} parent=1 // pred_region
      %137 = dma.done [#allocation5], 16
    $region33: #{tpu_custom_call.1} parent=1 // pred_fallthru
      _
    %138 = sfence
    %139 = vsyncpa [#allocation4], 1
    %140 = vsyncpa [#allocation7], 1
    %141 = vsyncpa [#allocation5], 1

</llo_original>
